<compile_context>
chip_gen: v5e
topology: v5e:2x2
jax: 0.10.0
libtpu: 0.0.40
codegen_flags: <defaults>
</compile_context>

<pallas_src>
import functools

import jax
import jax.numpy as jnp
from jax.experimental import pallas as pl
from jax.experimental.pallas import tpu as pltpu


def mlp_critic_kernel(x_ref, w1_ref, b1_ref, w2_ref, b2_ref, w3_ref, b3_ref, o_ref):
    # obs streamed in its stored dtype; cast to the MXU dtype here (no separate
    # wrapper-side convert pass over HBM).
    x = x_ref[...].astype(w1_ref.dtype)

    # Layer 1: bf16 MXU matmul, f32 accumulation.
    h = jnp.dot(x, w1_ref[...], preferred_element_type=jnp.float32)
    # Bias + tanh in the activation dtype carried by the biases (bf16 on
    # v6e/v7x whose VPU/EUP are bf16-capable, f32 on v5e).  On the bf16 path
    # this also feeds layer 2 directly without a second cast.
    h = jnp.tanh(h.astype(b1_ref.dtype) + b1_ref[...])

    # Layer 2.
    h = jnp.dot(h.astype(w2_ref.dtype), w2_ref[...], preferred_element_type=jnp.float32)
    h = jnp.tanh(h.astype(b2_ref.dtype) + b2_ref[...])

    # Output head (h2 -> 1) on the otherwise-idle MXU, contracted so the result
    # comes out lane-major: (1, h2) . (tile, h2)^T -> (1, tile).  This replaces
    # the VPU-mul + XLU cross-lane reduce and gives lane-dense stores instead
    # of tile/8 masked single-lane vst.msk stores.
    v = jax.lax.dot_general(
        w3_ref[...], h.astype(w3_ref.dtype),
        dimension_numbers=(((1,), (1,)), ((), ())),
        preferred_element_type=jnp.float32)
    v = v + b3_ref[0]                       # scalar bias from SMEM
    o_ref[...] = v.reshape(o_ref.shape).astype(o_ref.dtype)


def _round_up(x, m):
    return ((x + m - 1) // m) * m


def _default_act_dtype():
    """bf16 activations on chips with a bf16 VPU/EUP (v6e, v7x); f32 otherwise."""
    try:
        kind = jax.devices()[0].device_kind.lower()
    except Exception:
        return jnp.bfloat16
    for old in ("v2", "v3", "v4", "v5"):
        if old in kind:
            return jnp.float32
    return jnp.bfloat16


def prepare_params(params, *, act_dtype=None, mxu_dtype=jnp.bfloat16):
    """Cast/reshape parameters ONCE (call outside jit / outside the hot loop).

    Input params: w1,b1,w2,b2,w3,b3 in f32, weights stored (in, out).
    Output: MXU weights in bf16, biases in the activation dtype, w3 as a
    (1, h2) row, b3 as a (1,) scalar for SMEM.
    """
    if act_dtype is None:
        act_dtype = _default_act_dtype()
    h2 = params["w2"].shape[1]
    return {
        "w1": params["w1"].astype(mxu_dtype),
        "b1": params["b1"].reshape(1, -1).astype(act_dtype),
        "w2": params["w2"].astype(mxu_dtype),
        "b2": params["b2"].reshape(1, -1).astype(act_dtype),
        "w3_row": params["w3"].reshape(1, h2).astype(act_dtype),
        "b3": params["b3"].reshape(-1).astype(jnp.float32),
    }


def _select_tiling(batch, tile_b_max):
    """Pick (grid_steps, tile) with tile a multiple of 8 and small padding waste."""
    n = max(1, pl.cdiv(batch, max(8, tile_b_max)))
    # Keep >= 2 grid steps on large batches so ("parallel",) can shard the grid
    # across the 2 TensorCores on v7x (negligible extra overhead on the
    # single-TC v5e/v6e since each step still has >= 1024 rows).
    if n == 1 and batch >= 2 * 1024:
        n = 2
    tile = _round_up(pl.cdiv(batch, n), 8)
    return n, tile


def mlp_critic_forward(obs, params, *, tile_b=4096):
    """obs: (B, obs_dim) float32; params from prepare_params.
    Returns value estimates of shape (B,) == torch.squeeze(v_net(obs), -1)."""
    B, obs_dim = obs.shape
    w1, b1, w2, b2, w3_row, b3 = (
        params[k] for k in ("w1", "b1", "w2", "b2", "w3_row", "b3"))
    h1, h2 = w1.shape[1], w2.shape[1]

    n, tile = _select_tiling(B, tile_b)

    # VMEM per step (lane padding to 128 included): obs block (tile, obs_dim)
    # occupies ~tile*128*4 B per buffer (double-buffered), the f32/bf16
    # (tile, 128-padded) intermediates a few MiB each, and the lane-dense
    # (1, 1, tile) f32 output is tiny.  At the default tile <= 4096 this stays
    # well under the 32 MiB scoped-VMEM default on v5e/v6e/v7x (64 MiB physical
    # on v7x); re-derive the cap if obs_dim or the hidden widths grow.
    vmem = pltpu.MemorySpace.VMEM
    smem = pltpu.MemorySpace.SMEM
    const2 = lambda i: (0, 0)  # weights/biases: same block every step -> resident

    out = pl.pallas_call(
        mlp_critic_kernel,
        out_shape=jax.ShapeDtypeStruct((n, 1, tile), jnp.float32),
        grid=(n,),
        in_specs=[
            pl.BlockSpec((tile, obs_dim), lambda i: (i, 0), memory_space=vmem),
            pl.BlockSpec((obs_dim, h1), const2, memory_space=vmem),
            pl.BlockSpec((1, h1), const2, memory_space=vmem),
            pl.BlockSpec((h1, h2), const2, memory_space=vmem),
            pl.BlockSpec((1, h2), const2, memory_space=vmem),
            pl.BlockSpec((1, h2), const2, memory_space=vmem),
            pl.BlockSpec(memory_space=smem),
        ],
        out_specs=pl.BlockSpec((1, 1, tile), lambda i: (i, 0, 0), memory_space=vmem),
        compiler_params=pltpu.CompilerParams(
            dimension_semantics=("parallel",),
        ),
    )(obs, w1, b1, w2, b2, w3_row, b3)

    # Lane-dense (n, 1, tile) slab -> flat (n*tile,), drop padded tail rows.
    return out.reshape(-1)[:B]


def init_params(key, obs_dim, hidden_sizes):
    """Deterministic PyTorch-like init: U(-1/sqrt(fan_in), 1/sqrt(fan_in))."""
    sizes = [obs_dim] + list(hidden_sizes) + [1]
    params = {}
    for j in range(len(sizes) - 1):
        fan_in, fan_out = sizes[j], sizes[j + 1]
        key, kw, kb = jax.random.split(key, 3)
        bound = 1.0 / jnp.sqrt(jnp.float32(fan_in))
        # stored (in, out) so the kernel does x @ W
        params[f"w{j + 1}"] = jax.random.uniform(
            kw, (fan_in, fan_out), jnp.float32, -bound, bound)
        params[f"b{j + 1}"] = jax.random.uniform(
            kb, (1, fan_out), jnp.float32, -bound, bound)
    return params


def reference_forward(obs, params):
    h = jnp.tanh(obs @ params["w1"] + params["b1"])
    h = jnp.tanh(h @ params["w2"] + params["b2"])
    v = h @ params["w3"] + params["b3"]
    return jnp.squeeze(v, axis=-1)


if __name__ == "__main__":
    key = jax.random.PRNGKey(0)
    batch, obs_dim, hidden_sizes = 8, 16, (32, 32)

    k_obs, k_params, k_obs2 = jax.random.split(key, 3)
    obs = jax.random.normal(k_obs, (batch, obs_dim), jnp.float32)
    raw_params = init_params(k_params, obs_dim, hidden_sizes)
    params = prepare_params(raw_params)  # cast once, outside the jitted forward

    # Small single-tile case (matches the module's toy sizes).
    v = jax.jit(mlp_critic_forward)(obs, params)
    jax.block_until_ready(v)
    v_ref = reference_forward(obs, raw_params)
    assert v.shape == (batch,), v.shape
    # bf16 MXU operands (and bf16 tanh on v6e/v7x) -> ~1e-2-level tolerance.
    assert jnp.allclose(v, v_ref, atol=3e-2, rtol=3e-2), (v, v_ref)

    # Multi-tile + ragged-batch path (grid > 1, batch not a multiple of tile).
    obs2 = jax.random.normal(k_obs2, (37, obs_dim), jnp.float32)
    v2 = jax.jit(functools.partial(mlp_critic_forward, tile_b=16))(obs2, params)
    jax.block_until_ready(v2)
    v2_ref = reference_forward(obs2, raw_params)
    assert v2.shape == (37,), v2.shape
    assert jnp.allclose(v2, v2_ref, atol=3e-2, rtol=3e-2), (v2, v2_ref)

    print("KERNEL_OK")
</pallas_src>

<mosaic_0001>
module attributes {stable_mosaic.version = 11 : i64} {
  func.func @mlp_critic_kernel(%arg0: i32, %arg1: memref<8x16xf32, #tpu.memory_space<vmem>>, %arg2: memref<16x32xbf16, #tpu.memory_space<vmem>>, %arg3: memref<1x32xbf16, #tpu.memory_space<vmem>>, %arg4: memref<32x32xbf16, #tpu.memory_space<vmem>>, %arg5: memref<1x32xbf16, #tpu.memory_space<vmem>>, %arg6: memref<1x32xbf16, #tpu.memory_space<vmem>>, %arg7: memref<1xf32, #tpu.memory_space<smem>>, %arg8: memref<1x1x8xf32, #tpu.memory_space<vmem>>) attributes {dimension_semantics = [#tpu.dimension_semantics<parallel>], iteration_bounds = array<i64: 1>, scalar_prefetch = 0 : i64, scratch_operands = 0 : i64, tpu.core_type = #tpu.core_type<tc>, window_params = [{transform_indices = @transform_0, window_bounds = array<i64: 8, 16>}, {pipeline_mode = #tpu.pipeline_mode<synchronous>, transform_indices = @transform_1, window_bounds = array<i64: 16, 32>}, {pipeline_mode = #tpu.pipeline_mode<synchronous>, transform_indices = @transform_2, window_bounds = array<i64: 1, 32>}, {pipeline_mode = #tpu.pipeline_mode<synchronous>, transform_indices = @transform_3, window_bounds = array<i64: 32, 32>}, {pipeline_mode = #tpu.pipeline_mode<synchronous>, transform_indices = @transform_4, window_bounds = array<i64: 1, 32>}, {pipeline_mode = #tpu.pipeline_mode<synchronous>, transform_indices = @transform_5, window_bounds = array<i64: 1, 32>}, {transform_indices = @transform_6, window_bounds = array<i64: 1>}, {transform_indices = @transform_7, window_bounds = array<i64: 1, 1, 8>}]} {
    %c0 = arith.constant 0 : index
    %c0_0 = arith.constant 0 : index
    %0 = vector.load %arg1[%c0, %c0_0] : memref<8x16xf32, #tpu.memory_space<vmem>>, vector<8x16xf32>
    %1 = arith.truncf %0 : vector<8x16xf32> to vector<8x16xbf16>
    %c0_1 = arith.constant 0 : index
    %c0_2 = arith.constant 0 : index
    %2 = vector.load %arg2[%c0_1, %c0_2] : memref<16x32xbf16, #tpu.memory_space<vmem>>, vector<16x32xbf16>
    %cst = arith.constant dense<0.000000e+00> : vector<8x32xf32>
    %3 = tpu.matmul %1, %2, %cst {dimension_numbers = #tpu.dot_dimension_numbers<[1], [0], [0], [1], [0, 0, 1, 1], [], []>} : vector<8x16xbf16>, vector<16x32xbf16>, vector<8x32xf32> -> vector<8x32xf32>
    %4 = arith.truncf %3 : vector<8x32xf32> to vector<8x32xbf16>
    %c0_3 = arith.constant 0 : index
    %c0_4 = arith.constant 0 : index
    %5 = vector.load %arg3[%c0_3, %c0_4] : memref<1x32xbf16, #tpu.memory_space<vmem>>, vector<1x32xbf16>
    %6 = vector.broadcast %5 : vector<1x32xbf16> to vector<8x32xbf16>
    %7 = arith.addf %4, %6 : vector<8x32xbf16>
    %8 = math.tanh %7 : vector<8x32xbf16>
    %c0_5 = arith.constant 0 : index
    %c0_6 = arith.constant 0 : index
    %9 = vector.load %arg4[%c0_5, %c0_6] : memref<32x32xbf16, #tpu.memory_space<vmem>>, vector<32x32xbf16>
    %cst_7 = arith.constant dense<0.000000e+00> : vector<8x32xf32>
    %10 = tpu.matmul %8, %9, %cst_7 {dimension_numbers = #tpu.dot_dimension_numbers<[1], [0], [0], [1], [0, 0, 1, 1], [], []>} : vector<8x32xbf16>, vector<32x32xbf16>, vector<8x32xf32> -> vector<8x32xf32>
    %11 = arith.truncf %10 : vector<8x32xf32> to vector<8x32xbf16>
    %c0_8 = arith.constant 0 : index
    %c0_9 = arith.constant 0 : index
    %12 = vector.load %arg5[%c0_8, %c0_9] : memref<1x32xbf16, #tpu.memory_space<vmem>>, vector<1x32xbf16>
    %13 = vector.broadcast %12 : vector<1x32xbf16> to vector<8x32xbf16>
    %14 = arith.addf %11, %13 : vector<8x32xbf16>
    %15 = math.tanh %14 : vector<8x32xbf16>
    %c0_10 = arith.constant 0 : index
    %c0_11 = arith.constant 0 : index
    %16 = vector.load %arg6[%c0_10, %c0_11] : memref<1x32xbf16, #tpu.memory_space<vmem>>, vector<1x32xbf16>
    %cst_12 = arith.constant dense<0.000000e+00> : vector<1x8xf32>
    %17 = tpu.matmul %16, %15, %cst_12 {dimension_numbers = #tpu.dot_dimension_numbers<[1], [1], [0], [0], [0, 0, 1, 0], [], []>} : vector<1x32xbf16>, vector<8x32xbf16>, vector<1x8xf32> -> vector<1x8xf32>
    %c0_13 = arith.constant 0 : index
    %18 = memref.load %arg7[%c0_13] : memref<1xf32, #tpu.memory_space<smem>>
    %19 = vector.broadcast %18 : f32 to vector<1x8xf32>
    %20 = arith.addf %17, %19 : vector<1x8xf32>
    %21 = vector.shape_cast %20 : vector<1x8xf32> to vector<1x1x8xf32>
    %c0_14 = arith.constant 0 : index
    %c0_15 = arith.constant 0 : index
    %c0_16 = arith.constant 0 : index
    %22 = vector.load %arg8[%c0_14, %c0_15, %c0_16] : memref<1x1x8xf32, #tpu.memory_space<vmem>>, vector<1x1x8xf32>
    tpu.vector_store %arg8[%c0_14, %c0_15, %c0_16], %21 {strides = array<i32>} : memref<1x1x8xf32, #tpu.memory_space<vmem>>, vector<1x1x8xf32>,
    return
  }
  func.func @transform_0(%arg0: i32) -> (i32, i32) {
    %c0_i32 = arith.constant 0 : i32
    %c0_i32_0 = arith.constant 0 : i32
    return %arg0, %c0_i32 : i32, i32
  }
  func.func @transform_1(%arg0: i32) -> (i32, i32) {
    %c0_i32 = arith.constant 0 : i32
    %c0_i32_0 = arith.constant 0 : i32
    %c0_i32_1 = arith.constant 0 : i32
    return %c0_i32, %c0_i32_0 : i32, i32
  }
  func.func @transform_2(%arg0: i32) -> (i32, i32) {
    %c0_i32 = arith.constant 0 : i32
    %c0_i32_0 = arith.constant 0 : i32
    %c0_i32_1 = arith.constant 0 : i32
    return %c0_i32, %c0_i32_0 : i32, i32
  }
  func.func @transform_3(%arg0: i32) -> (i32, i32) {
    %c0_i32 = arith.constant 0 : i32
    %c0_i32_0 = arith.constant 0 : i32
    %c0_i32_1 = arith.constant 0 : i32
    return %c0_i32, %c0_i32_0 : i32, i32
  }
  func.func @transform_4(%arg0: i32) -> (i32, i32) {
    %c0_i32 = arith.constant 0 : i32
    %c0_i32_0 = arith.constant 0 : i32
    %c0_i32_1 = arith.constant 0 : i32
    return %c0_i32, %c0_i32_0 : i32, i32
  }
  func.func @transform_5(%arg0: i32) -> (i32, i32) {
    %c0_i32 = arith.constant 0 : i32
    %c0_i32_0 = arith.constant 0 : i32
    %c0_i32_1 = arith.constant 0 : i32
    return %c0_i32, %c0_i32_0 : i32, i32
  }
  func.func @transform_6(%arg0: i32) -> i32 {
    %c0_i32 = arith.constant 0 : i32
    %c0_i32_0 = arith.constant 0 : i32
    return %c0_i32 : i32
  }
  func.func @transform_7(%arg0: i32) -> (i32, i32, i32) {
    %c0_i32 = arith.constant 0 : i32
    %c0_i32_0 = arith.constant 0 : i32
    %c0_i32_1 = arith.constant 0 : i32
    return %arg0, %c0_i32, %c0_i32_0 : i32, i32, i32
  }
}

</mosaic_0001>

<llo_original>
// kernel: mlp_critic_forward.1
$region0: #{mlp_critic_forward.1}
  #allocation0 [shape = 'u32[]', space=smem, size = 0x4, offset = 0x4, fixed_abs, tag = 'smem constant byte address 0x4 - core index']
  #allocation1 [shape = 'u32[72,128]{1,0:T(1,128)}', space=vmem, size = 0x9000, scoped, tag = 'internal scratch']
  #allocation2 [shape = 'f32[1]{0:T(128)S(6)}', space=smem, size = 0x200, scoped, tag = 'scoped memory for mlp_critic_forward.1']
  %s0 = inlined_call_operand.hbm [shape: f32[8,16], index: 0, kind: input, shape index: {}]
  %s1 = inlined_call_operand.hbm [shape: bf16[16,32], index: 1, kind: input, shape index: {}]
  %s2 = inlined_call_operand.vmem [shape: bf16[1,32], index: 2, kind: input, shape index: {}]
  %s3 = inlined_call_operand.hbm [shape: bf16[32,32], index: 3, kind: input, shape index: {}]
  %s4 = inlined_call_operand.vmem [shape: bf16[1,32], index: 4, kind: input, shape index: {}]
  %s5 = inlined_call_operand.vmem [shape: bf16[1,32], index: 5, kind: input, shape index: {}]
  %s6 = inlined_call_operand.<no memory space> [shape: f32[1], index: 6, kind: input, shape index: {}]
  %s7 = inlined_call_operand.hbm [shape: f32[1,1,8], index: 7, kind: output, shape index: {}]
  %s8 = sld [smem:[#allocation0]]
  $region50: #{mlp_critic_forward.1} parent=0
    _
  %s10 = ssub.s32 1, %s8
  %s11 = scalar_select 0, %s10, %s8
  %12 = sst [smem:[#allocation2]] %s6
  $region1: #{mlp_critic_forward.1} parent=0
    #allocation3 [shape = 'u8[4096]{0}', space=vmem, size = 0x1000, scoped, tag = 'input window, operand 0, single buffered']
    #allocation4 [shape = 's32[1]{0}', space=sflag, size = 0x4, scoped, tag = 'scoped memory for mlp_critic_forward.1']
    #allocation5 [shape = 's32[1]{0}', space=sflag, size = 0x4, scoped, tag = 'scoped memory for mlp_critic_forward.1']
    #allocation6 [shape = 'u8[4096]{0}', space=vmem, size = 0x1000, scoped, tag = 'input window, operand 1, single buffered']
    #allocation7 [shape = 's32[1]{0}', space=sflag, size = 0x4, scoped, tag = 'scoped memory for mlp_critic_forward.1']
    #allocation8 [shape = 'u8[8192]{0}', space=vmem, size = 0x2000, scoped, tag = 'input window, operand 3, single buffered']
    #allocation9 [shape = 'u8[512]{0}', space=vmem, size = 0x400, scoped, tag = 'output window, operand 0, single buffered']
    %13 = vsyncpa [#allocation4], 0
    %14 = vsyncpa [#allocation7], 0
    %15 = vsyncpa [#allocation5], 0
    // Predicated region
    $region2: #{mlp_critic_forward.1} parent=1 // pred_check
      _
    $region3: #{mlp_critic_forward.1} parent=1 // pred_check_branch
      %17 = sbr.rel (0) target = $region5
    $region4: #{mlp_critic_forward.1} parent=1 // pred_region
      %19 = vsyncadd [#allocation4], 0
      %s21 = sshll.u32 %s0, 4
      %s22 = int_to_ptr.hbm [resolvable:$true] %s21
      %s23 = sshll.u32 [#allocation3], 4
      %s24 = int_to_ptr.vmem [resolvable:$true] %s23
      %26 = dma.hbm_to_vmem [thread:$0]  %s22, 128, %s24, [#allocation4]
    $region5: #{mlp_critic_forward.1} parent=1 // pred_fallthru
      _
    // Predicated region
    $region6: #{mlp_critic_forward.1} parent=1 // pred_check
      _
    $region7: #{mlp_critic_forward.1} parent=1 // pred_check_branch
      %28 = sbr.rel (0) target = $region9
    $region8: #{mlp_critic_forward.1} parent=1 // pred_region
      %30 = vsyncadd [#allocation7], 0
      %s31 = sshll.u32 %s1, 4
      %s32 = int_to_ptr.hbm [resolvable:$true] %s31
      %s33 = sshll.u32 [#allocation6], 4
      %s34 = int_to_ptr.vmem [resolvable:$true] %s33
      %39 = dma.hbm_to_vmem [thread:$0]  %s32, 128, %s34, [#allocation7], 64, 64, 4
    $region9: #{mlp_critic_forward.1} parent=1 // pred_fallthru
      _
    // Predicated region
    $region10: #{mlp_critic_forward.1} parent=1 // pred_check
      _
    $region11: #{mlp_critic_forward.1} parent=1 // pred_check_branch
      %41 = sbr.rel (0) target = $region13
    $region12: #{mlp_critic_forward.1} parent=1 // pred_region
      _
    $region13: #{mlp_critic_forward.1} parent=1 // pred_fallthru
      _
    // Predicated region
    $region14: #{mlp_critic_forward.1} parent=1 // pred_check
      _
    $region15: #{mlp_critic_forward.1} parent=1 // pred_check_branch
      %43 = sbr.rel (0) target = $region17
    $region16: #{mlp_critic_forward.1} parent=1 // pred_region
      %45 = vsyncadd [#allocation7], 0
      %s46 = sshll.u32 %s3, 4
      %s47 = int_to_ptr.hbm [resolvable:$true] %s46
      %s48 = sshll.u32 [#allocation8], 4
      %s49 = int_to_ptr.vmem [resolvable:$true] %s48
      %54 = dma.hbm_to_vmem [thread:$0]  %s47, 256, %s49, [#allocation7], 64, 64, 4
    $region17: #{mlp_critic_forward.1} parent=1 // pred_fallthru
      _
    // Predicated region
    $region18: #{mlp_critic_forward.1} parent=1 // pred_check
      _
    $region19: #{mlp_critic_forward.1} parent=1 // pred_check_branch
      %56 = sbr.rel (0) target = $region21
    $region20: #{mlp_critic_forward.1} parent=1 // pred_region
      _
    $region21: #{mlp_critic_forward.1} parent=1 // pred_fallthru
      _
    // Predicated region
    $region22: #{mlp_critic_forward.1} parent=1 // pred_check
      _
    $region23: #{mlp_critic_forward.1} parent=1 // pred_check_branch
      %58 = sbr.rel (0) target = $region25
    $region24: #{mlp_critic_forward.1} parent=1 // pred_region
      _
    $region25: #{mlp_critic_forward.1} parent=1 // pred_fallthru
      _
    // Predicated region
    $region26: #{mlp_critic_forward.1} parent=1 // pred_check
      _
    $region27: #{mlp_critic_forward.1} parent=1 // pred_check_branch
      %60 = sbr.rel (0) target = $region29
    $region28: #{mlp_critic_forward.1} parent=1 // pred_region
      _
    $region29: #{mlp_critic_forward.1} parent=1 // pred_fallthru
      _
    // Predicated region
    $region30: #{mlp_critic_forward.1} parent=1 // pred_check
      _
    $region31: #{mlp_critic_forward.1} parent=1 // pred_check_branch
      %62 = sbr.rel (0) target = $region33
    $region32: #{mlp_critic_forward.1} parent=1 // pred_region
      %64 = dma.done [#allocation4], 128
    $region33: #{mlp_critic_forward.1} parent=1 // pred_fallthru
      _
    // Predicated region
    $region34: #{mlp_critic_forward.1} parent=1 // pred_check
      _
    $region35: #{mlp_critic_forward.1} parent=1 // pred_check_branch
      %66 = sbr.rel (0) target = $region37
    $region36: #{mlp_critic_forward.1} parent=1 // pred_region
      %68 = dma.done [#allocation7], 128
    $region37: #{mlp_critic_forward.1} parent=1 // pred_fallthru
      _
    // Predicated region
    $region38: #{mlp_critic_forward.1} parent=1 // pred_check
      _
    $region39: #{mlp_critic_forward.1} parent=1 // pred_check_branch
      %70 = sbr.rel (0) target = $region41
    $region40: #{mlp_critic_forward.1} parent=1 // pred_region
      %72 = dma.done [#allocation7], 256
    $region41: #{mlp_critic_forward.1} parent=1 // pred_fallthru
      _
    %v74 = vld [vmem:[#allocation3] sm:$0xff]
    %v75 = vpack.c.bf16 %v74, %v74
    %v76 = vld [vmem:[#allocation6] sm:$0xf]
    %v77 = vld [vmem:[#allocation6 + $0x4] sm:$0xf]
    %v80 = vunpack.c.l.b16 %v76
    %v81 = vunpack.c.l.b16 %v77
    %v82 = vpack.c.b16 %v81, %v80
    %vm84 = vcmask 130048
    %v86 = vsel %vm84, %v75, 0
    %88 = vmatpush.bf16.msra.mxu0 0
    %89 = vmatpush.bf16.msra.mxu0 0
    %90 = vmatpush.bf16.msra.mxu0 0
    %91 = vmatpush.bf16.msra.mxu0 0
    %92 = vmatpush.bf16.msra.mxu0 0
    %93 = vmatpush.bf16.msra.mxu0 0
    %94 = vmatpush.bf16.msra.mxu0 0
    %95 = vmatpush.bf16.msra.mxu0 %v82
    %96 = vmatmul.bf16.gmra.mxu0 %v86
    %v97 = vpop.f32.mrf.mxu0
    %v98 = vadd.f32 0.0, %v97
    %v99 = vpop.f32.mrf.mxu0
    %100 = vdwg.mxu0
    %v101 = vpack.c.bf16 %v98, %v98
    %v102 = vld [vmem:[%s2] sm:$0x1]
    %v104 = vpack.i.b16 %v102, %v102
    %v106 = vperm.slane %v104, 0
    %v107 = vunpack.c.l.bf16 %v101
    %v108 = vunpack.c.l.bf16 %v106
    %v109 = vadd.f32 %v107, %v108
    %v110 = vpack.c.bf16 %v109, %v109
    %v111 = vunpack.c.l.bf16 %v110
    %v112 = vtanh.pop %v111
    %v113 = vpack.c.bf16 %v112, %v112
    %v114 = vld [vmem:[#allocation8] sm:$0xf]
    %v115 = vld [vmem:[#allocation8 + $0x4] sm:$0xf]
    %v116 = vld [vmem:[#allocation8 + $0x8] sm:$0xf]
    %v117 = vld [vmem:[#allocation8 + $0xc] sm:$0xf]
    %v122 = vunpack.c.l.b16 %v114
    %v123 = vunpack.c.l.b16 %v115
    %v124 = vunpack.c.l.b16 %v116
    %v125 = vunpack.c.l.b16 %v117
    %v126 = vpack.c.b16 %v123, %v122
    %v127 = vpack.c.b16 %v125, %v124
    %vm130 = vcmask 261120
    %v132 = vsel %vm130, %v113, 0
    %134 = vmatpush.bf16.msra.mxu0 0
    %135 = vmatpush.bf16.msra.mxu0 0
    %136 = vmatpush.bf16.msra.mxu0 0
    %137 = vmatpush.bf16.msra.mxu0 0
    %138 = vmatpush.bf16.msra.mxu0 0
    %139 = vmatpush.bf16.msra.mxu0 0
    %140 = vmatpush.bf16.msra.mxu0 %v127
    %141 = vmatpush.bf16.msra.mxu0 %v126
    %142 = vmatmul.bf16.gmra.mxu0 %v132
    %v143 = vpop.f32.mrf.mxu0
    %v144 = vadd.f32 0.0, %v143
    %v145 = vpop.f32.mrf.mxu0
    %146 = vdwg.mxu0
    %v147 = vpack.c.bf16 %v144, %v144
    %v148 = vld [vmem:[%s4] sm:$0x1]
    %v150 = vpack.i.b16 %v148, %v148
    %v152 = vperm.slane %v150, 0
    %v153 = vunpack.c.l.bf16 %v147
    %v154 = vunpack.c.l.bf16 %v152
    %v155 = vadd.f32 %v153, %v154
    %v156 = vpack.c.bf16 %v155, %v155
    %v157 = vunpack.c.l.bf16 %v156
    %v158 = vtanh.pop %v157
    %v159 = vpack.c.bf16 %v158, %v158
    %v160 = vld [vmem:[%s5] sm:$0x1]
    %s161 = sld [smem:[#allocation2]]
    %v162 = vstv %s161
    %v164 = vsel %vm130, %v160, 0
    %v167 = vsel %vm130, %v159, 0
    %169 = vmatpush.bf16.xpose.msra.mxu0 0
    %170 = vmatpush.bf16.xpose.msra.mxu0 0
    %171 = vmatpush.bf16.xpose.msra.mxu0 0
    %172 = vmatpush.bf16.xpose.msra.mxu0 0
    %173 = vmatpush.bf16.xpose.msra.mxu0 0
    %174 = vmatpush.bf16.xpose.msra.mxu0 0
    %175 = vmatpush.bf16.xpose.msra.mxu0 0
    %176 = vmatpush.bf16.xpose.msra.mxu0 %v167
    %177 = vmatmul.bf16.gmra.mxu0 %v164
    %v178 = vpop.f32.mrf.mxu0
    %v179 = vadd.f32 %v162, %v178
    %v180 = vpop.f32.mrf.mxu0
    %181 = vdwg.mxu0
    %vm182 = vcmask 57344
    %183 = vst.msk [vmem:[#allocation9] sm:$0x1] %vm182, %v179
    // Predicated region
    $region42: #{mlp_critic_forward.1} parent=1 // pred_check
      _
    $region43: #{mlp_critic_forward.1} parent=1 // pred_check_branch
      %185 = sbr.rel (0) target = $region45
    $region44: #{mlp_critic_forward.1} parent=1 // pred_region
      %187 = vsyncadd [#allocation5], 0
      %s189 = sshll.u32 [#allocation9], 4
      %s190 = int_to_ptr.vmem [resolvable:$true] %s189
      %s191 = sshll.u32 %s7, 4
      %s192 = int_to_ptr.hbm [resolvable:$true] %s191
      %194 = dma.vmem_to_hbm [thread:$0]  %s190, 16, %s192, [#allocation5]
    $region45: #{mlp_critic_forward.1} parent=1 // pred_fallthru
      _
    // Predicated region
    $region46: #{mlp_critic_forward.1} parent=1 // pred_check
      _
    $region47: #{mlp_critic_forward.1} parent=1 // pred_check_branch
      %196 = sbr.rel (0) target = $region49
    $region48: #{mlp_critic_forward.1} parent=1 // pred_region
      %198 = dma.done [#allocation5], 16
    $region49: #{mlp_critic_forward.1} parent=1 // pred_fallthru
      _
    %199 = vsyncpa [#allocation4], 1
    %200 = vsyncpa [#allocation7], 1
    %201 = vsyncpa [#allocation5], 1

</llo_original>
